<compile_context>
chip_gen: v5e
topology: v5e:2x2
jax: 0.10.0
libtpu: 0.0.40
codegen_flags: <defaults>
</compile_context>

<pallas_src>
import jax
import jax.numpy as jnp
from jax.experimental import pallas as pl
from jax.experimental.pallas import tpu as pltpu


def dense_encoder_kernel(idx_ref, table_ref, out_ref):
    """Fused DenseEncoder forward for one batch tile.

    idx_ref   : (TB, 2)   int32   column 0 = trip1, column 1 = trip2
    table_ref : (2V, 2F)  float32 block-diagonal activation table:
                [0:V, 0:F] = T, [V:2V, F:2F] = T, zeros elsewhere,
                where T = tanh(emb @ W + b).
    out_ref   : (TB, 2F)  float32 lanes [0,F) = mapped1, lanes [F,2F) = mapped2
    """
    V2 = table_ref.shape[0]
    V = V2 // 2

    idx = idx_ref[...]                                            # (TB, 2) int32
    col = jax.lax.broadcasted_iota(jnp.int32, (1, V2), 1)         # (1, 2V)

    # Combined one-hot: lanes [0,V) select row trip1, lanes [V,2V) select
    # row trip2 (shifted by V) of the block-diagonal table.
    sel = jnp.where(col < V, idx[:, 0:1], idx[:, 1:2] + V)        # (TB, 2V)
    oh = (sel == col).astype(jnp.float32)                         # (TB, 2V)

    # Single MXU matmul emits the lane-dense (TB, 2F) result directly.
    # One-hot x f32-table is exact (each output is 1.0 * one table element).
    out_ref[...] = jnp.dot(
        oh, table_ref[...], preferred_element_type=jnp.float32
    ).astype(out_ref.dtype)


def dense_encoder_forward(trip1, trip2, emb_table, weight_t, bias,
                          *, max_batch_tile=1024):
    B = trip1.shape[0]
    V, D = emb_table.shape
    F = weight_t.shape[1]

    # Hoisted grid-invariant table: T = tanh(emb @ W + b) for all V rows,
    # computed once at full precision.  Row-gather of T == tanh(emb[idx] @ W + b).
    table = jnp.tanh(
        jnp.dot(emb_table, weight_t, precision=jax.lax.Precision.HIGHEST)
        + bias.reshape(1, F)
    )                                                             # (V, F) f32
    zeros = jnp.zeros_like(table)
    # Block-diagonal (2V, 2F) layout so one matmul produces [mapped1 | mapped2].
    table_bd = jnp.concatenate(
        [jnp.concatenate([table, zeros], axis=1),
         jnp.concatenate([zeros, table], axis=1)], axis=0)        # (2V, 2F)

    # Merge the two index vectors into one (B, 2) int32 block -> one input DMA.
    # Clamp like a jnp gather (torch.nn.Embedding would raise on OOB indices).
    idx = jnp.stack([trip1.astype(jnp.int32), trip2.astype(jnp.int32)], axis=-1)
    idx = jnp.clip(idx, 0, V - 1)

    # Batch tiling: as large as possible (amortize ~0.35 us/step grid overhead),
    # but keep >= 2 grid steps when the batch allows so v7x's 2 TCs both engage.
    Bp = max(8, ((B + 7) // 8) * 8)
    TB = min(max_batch_tile, Bp)
    if Bp >= 16:
        TB = min(TB, ((Bp // 2 + 7) // 8) * 8)
    TB = max(TB, 8)
    Bp = ((Bp + TB - 1) // TB) * TB
    if Bp != B:
        # Padded rows use index 0 (valid row); their outputs are sliced away.
        idx = jnp.pad(idx, ((0, Bp - B), (0, 0)))

    out = pl.pallas_call(
        dense_encoder_kernel,
        out_shape=jax.ShapeDtypeStruct((Bp, 2 * F), jnp.float32),
        grid_spec=pltpu.PrefetchScalarGridSpec(
            num_scalar_prefetch=0,
            grid=(Bp // TB,),
            in_specs=[
                pl.BlockSpec((TB, 2), lambda i: (i, 0)),          # merged indices
                pl.BlockSpec((2 * V, 2 * F), lambda i: (0, 0)),   # block-diag table
            ],
            out_specs=pl.BlockSpec((TB, 2 * F), lambda i: (i, 0)),
        ),
        compiler_params=pltpu.CompilerParams(
            # Independent batch tiles -> shard across TensorCores on v7x.
            dimension_semantics=("parallel",),
        ),
    )(idx, table_bd)

    out = out[:B]
    return out[:, :F], out[:, F:]


def reference_forward(trip1, trip2, emb_table, weight_t, bias):
    hp = jax.lax.Precision.HIGHEST
    a = emb_table[trip1]
    b = emb_table[trip2]
    m1 = jnp.tanh(jnp.dot(a, weight_t, precision=hp) + bias)
    m2 = jnp.tanh(jnp.dot(b, weight_t, precision=hp) + bias)
    return m1, m2


if __name__ == "__main__":
    # Small shapes consistent with the module.
    num_emb = 16          # vocabulary size of the triple embedding table
    emb_dim = 32          # embedding_dim == in_features of the Linear
    out_features = 64
    batch = 8

    key = jax.random.PRNGKey(0)
    k_emb, k_w, k_b, k_i1, k_i2 = jax.random.split(key, 5)

    emb_table = jax.random.normal(k_emb, (num_emb, emb_dim), dtype=jnp.float32)
    # torch nn.Linear weight is (out_features, in_features); keep its transpose.
    weight = jax.random.normal(k_w, (out_features, emb_dim), dtype=jnp.float32) * 0.1
    weight_t = weight.T                                   # (emb_dim, out_features)
    bias = jax.random.normal(k_b, (out_features,), dtype=jnp.float32) * 0.1

    trip1 = jax.random.randint(k_i1, (batch,), 0, num_emb, dtype=jnp.int32)
    trip2 = jax.random.randint(k_i2, (batch,), 0, num_emb, dtype=jnp.int32)

    m1, m2 = dense_encoder_forward(trip1, trip2, emb_table, weight_t, bias)
    m1, m2 = jax.block_until_ready((m1, m2))

    r1, r2 = reference_forward(trip1, trip2, emb_table, weight_t, bias)
    assert jnp.allclose(m1, r1, atol=1e-5), "mapped1 mismatch"
    assert jnp.allclose(m2, r2, atol=1e-5), "mapped2 mismatch"

    print("KERNEL_OK")
</pallas_src>

<mosaic_0001>
module attributes {stable_mosaic.version = 11 : i64} {
  func.func @dense_encoder_kernel(%arg0: i32, %arg1: memref<8x2xi32, #tpu.memory_space<vmem>>, %arg2: memref<32x128xf32, #tpu.memory_space<vmem>>, %arg3: memref<8x128xf32, #tpu.memory_space<vmem>>) attributes {dimension_semantics = [#tpu.dimension_semantics<parallel>], iteration_bounds = array<i64: 1>, scalar_prefetch = 0 : i64, scratch_operands = 0 : i64, tpu.core_type = #tpu.core_type<tc>, window_params = [{transform_indices = @transform_0, window_bounds = array<i64: 8, 2>}, {pipeline_mode = #tpu.pipeline_mode<synchronous>, transform_indices = @transform_1, window_bounds = array<i64: 32, 128>}, {transform_indices = @transform_2, window_bounds = array<i64: 8, 128>}]} {
    %c0 = arith.constant 0 : index
    %c0_0 = arith.constant 0 : index
    %0 = vector.load %arg1[%c0, %c0_0] : memref<8x2xi32, #tpu.memory_space<vmem>>, vector<8x2xi32>
    %1 = tpu.iota {dimensions = array<i32: 1>} : vector<1x32xi32>
    %c16_i32 = arith.constant 16 : i32
    %2 = vector.broadcast %c16_i32 : i32 to vector<1x32xi32>
    %3 = arith.cmpi slt, %1, %2 : vector<1x32xi32>
    %4 = vector.extract_strided_slice %0 {offsets = [0, 0], sizes = [8, 1], strides = [1, 1]} : vector<8x2xi32> to vector<8x1xi32>
    %5 = vector.extract_strided_slice %0 {offsets = [0, 1], sizes = [8, 1], strides = [1, 1]} : vector<8x2xi32> to vector<8x1xi32>
    %c16_i32_1 = arith.constant 16 : i32
    %6 = vector.broadcast %c16_i32_1 : i32 to vector<8x1xi32>
    %7 = arith.addi %5, %6 : vector<8x1xi32>
    %8 = vector.shape_cast %3 : vector<1x32xi1> to vector<1x32xi1>
    %9 = vector.broadcast %8 : vector<1x32xi1> to vector<8x32xi1>
    %10 = vector.shape_cast %4 : vector<8x1xi32> to vector<8x1xi32>
    %11 = vector.broadcast %10 : vector<8x1xi32> to vector<8x32xi32>
    %12 = vector.shape_cast %7 : vector<8x1xi32> to vector<8x1xi32>
    %13 = vector.broadcast %12 : vector<8x1xi32> to vector<8x32xi32>
    %14 = arith.select %9, %11, %13 : vector<8x32xi1>, vector<8x32xi32>
    %15 = vector.broadcast %1 : vector<1x32xi32> to vector<8x32xi32>
    %16 = arith.cmpi eq, %14, %15 : vector<8x32xi32>
    %17 = arith.extui %16 : vector<8x32xi1> to vector<8x32xi32>
    %18 = arith.sitofp %17 : vector<8x32xi32> to vector<8x32xf32>
    %c0_2 = arith.constant 0 : index
    %c0_3 = arith.constant 0 : index
    %19 = vector.load %arg2[%c0_2, %c0_3] : memref<32x128xf32, #tpu.memory_space<vmem>>, vector<32x128xf32>
    %cst = arith.constant dense<0.000000e+00> : vector<8x128xf32>
    %20 = tpu.matmul %18, %19, %cst {dimension_numbers = #tpu.dot_dimension_numbers<[1], [0], [0], [1], [0, 0, 1, 1], [], []>} : vector<8x32xf32>, vector<32x128xf32>, vector<8x128xf32> -> vector<8x128xf32>
    %c0_4 = arith.constant 0 : index
    %c0_5 = arith.constant 0 : index
    %21 = vector.load %arg3[%c0_4, %c0_5] : memref<8x128xf32, #tpu.memory_space<vmem>>, vector<8x128xf32>
    tpu.vector_store %arg3[%c0_4, %c0_5], %20 {strides = array<i32>} : memref<8x128xf32, #tpu.memory_space<vmem>>, vector<8x128xf32>,
    return
  }
  func.func @transform_0(%arg0: i32) -> (i32, i32) {
    %c0_i32 = arith.constant 0 : i32
    %c0_i32_0 = arith.constant 0 : i32
    return %arg0, %c0_i32 : i32, i32
  }
  func.func @transform_1(%arg0: i32) -> (i32, i32) {
    %c0_i32 = arith.constant 0 : i32
    %c0_i32_0 = arith.constant 0 : i32
    %c0_i32_1 = arith.constant 0 : i32
    return %c0_i32, %c0_i32_0 : i32, i32
  }
  func.func @transform_2(%arg0: i32) -> (i32, i32) {
    %c0_i32 = arith.constant 0 : i32
    %c0_i32_0 = arith.constant 0 : i32
    return %arg0, %c0_i32 : i32, i32
  }
}

</mosaic_0001>

<llo_original>
// kernel: tpu_custom_call.1
$region0: #{tpu_custom_call.1}
  #allocation0 [shape = 'u32[]', space=smem, size = 0x4, offset = 0x4, fixed_abs, tag = 'smem constant byte address 0x4 - core index']
  #allocation1 [shape = 'u32[72,128]{1,0:T(1,128)}', space=vmem, size = 0x9000, scoped, tag = 'internal scratch']
  %s0 = inlined_call_operand.vmem [shape: s32[8,2], index: 0, kind: input, shape index: {}]
  %s1 = inlined_call_operand.hbm [shape: f32[32,128], index: 1, kind: input, shape index: {}]
  %s2 = inlined_call_operand.hbm [shape: f32[8,128], index: 2, kind: output, shape index: {}]
  %s3 = sld [smem:[#allocation0]]
  $region22: #{tpu_custom_call.1} parent=0
    _
  %s5 = ssub.s32 1, %s3
  %s6 = scalar_select 0, %s5, %s3
  $region1: #{tpu_custom_call.1} parent=0
    #allocation2 [shape = 'u8[16384]{0}', space=vmem, size = 0x4000, scoped, tag = 'input window, operand 1, single buffered']
    #allocation3 [shape = 's32[1]{0}', space=sflag, size = 0x4, scoped, tag = 'scoped memory for tpu_custom_call.1']
    #allocation4 [shape = 's32[1]{0}', space=sflag, size = 0x4, scoped, tag = 'scoped memory for tpu_custom_call.1']
    #allocation5 [shape = 'u8[4096]{0}', space=vmem, size = 0x1000, scoped, tag = 'output window, operand 0, single buffered']
    %7 = vsyncpa [#allocation3], 0
    %8 = vsyncpa [#allocation4], 0
    // Predicated region
    $region2: #{tpu_custom_call.1} parent=1 // pred_check
      _
    $region3: #{tpu_custom_call.1} parent=1 // pred_check_branch
      %10 = sbr.rel (0) target = $region5
    $region4: #{tpu_custom_call.1} parent=1 // pred_region
      _
    $region5: #{tpu_custom_call.1} parent=1 // pred_fallthru
      _
    // Predicated region
    $region6: #{tpu_custom_call.1} parent=1 // pred_check
      _
    $region7: #{tpu_custom_call.1} parent=1 // pred_check_branch
      %12 = sbr.rel (0) target = $region9
    $region8: #{tpu_custom_call.1} parent=1 // pred_region
      %14 = vsyncadd [#allocation3], 0
      %s15 = sshll.u32 %s1, 4
      %s16 = int_to_ptr.hbm [resolvable:$true] %s15
      %s17 = sshll.u32 [#allocation2], 4
      %s18 = int_to_ptr.vmem [resolvable:$true] %s17
      %23 = dma.hbm_to_vmem [thread:$0]  %s16, 512, %s18, [#allocation3], 128, 128, 8
    $region9: #{tpu_custom_call.1} parent=1 // pred_fallthru
      _
    // Predicated region
    $region10: #{tpu_custom_call.1} parent=1 // pred_check
      _
    $region11: #{tpu_custom_call.1} parent=1 // pred_check_branch
      %25 = sbr.rel (0) target = $region13
    $region12: #{tpu_custom_call.1} parent=1 // pred_region
      %27 = dma.done [#allocation3], 512
    $region13: #{tpu_custom_call.1} parent=1 // pred_fallthru
      _
    %v28 = vld [vmem:[%s0] sm:$0xff]
    %v29 = vlaneseq
    %v30 = vand.u32 %v29, 127
    %vm31 = vcmp.lt.s32.totalorder %v30, 16
    %v32 = vadd.s32 %v28, 16
    %v33 = vsel %vm31, 1, 0
    %vm34 = vcmp.eq.s32.totalorder %v33, 1
    %35 = vset.pattern.permute.xlu0 0
    %36 = vperm.xlu0 %35, %v28
    %v37 = vpop.permute.xlu0 %36
    %38 = vset.pattern.permute.xlu0 1
    %39 = vperm.xlu0 %38, %v32
    %v40 = vpop.permute.xlu0 %39
    %v41 = vsel %vm34, %v37, %v40
    %vm42 = vcmp.eq.s32.totalorder %v41, %v30
    %v43 = vsel %vm42, 1, 0
    %v44 = vcvt.s32.f32 %v43
    %v45 = vld [vmem:[#allocation2] sm:$0xff]
    %v46 = vld [vmem:[#allocation2 + $0x8] sm:$0xff]
    %v47 = vld [vmem:[#allocation2 + $0x10] sm:$0xff]
    %v48 = vld [vmem:[#allocation2 + $0x18] sm:$0xff]
    %vm49 = vcmask 261120
    %v51 = vsel %vm49, %v44, 0
    %53 = vmatpush.msra.mxu0 0.0
    %54 = vmatpush.msra.mxu0 0.0
    %55 = vmatpush.msra.mxu0 0.0
    %56 = vmatpush.msra.mxu0 0.0
    %57 = vmatpush.msra.mxu0 0.0
    %58 = vmatpush.msra.mxu0 0.0
    %59 = vmatpush.msra.mxu0 0.0
    %60 = vmatpush.msra.mxu0 0.0
    %61 = vmatpush.msra.mxu0 0.0
    %62 = vmatpush.msra.mxu0 0.0
    %63 = vmatpush.msra.mxu0 0.0
    %64 = vmatpush.msra.mxu0 0.0
    %65 = vmatpush.msra.mxu0 %v48
    %66 = vmatpush.msra.mxu0 %v47
    %67 = vmatpush.msra.mxu0 %v46
    %68 = vmatpush.msra.mxu0 %v45
    %69 = vmatmul.f32.gmra.mxu0 %v51
    %v70 = vpop.f32.mrf.mxu0
    %v71 = vadd.f32 0.0, %v70
    %72 = vdwg.mxu0
    %73 = vst [vmem:[#allocation5] sm:$0xff] %v71
    // Predicated region
    $region14: #{tpu_custom_call.1} parent=1 // pred_check
      _
    $region15: #{tpu_custom_call.1} parent=1 // pred_check_branch
      %75 = sbr.rel (0) target = $region17
    $region16: #{tpu_custom_call.1} parent=1 // pred_region
      %77 = vsyncadd [#allocation4], 0
      %s79 = sshll.u32 [#allocation5], 4
      %s80 = int_to_ptr.vmem [resolvable:$true] %s79
      %s81 = sshll.u32 %s2, 4
      %s82 = int_to_ptr.hbm [resolvable:$true] %s81
      %84 = dma.vmem_to_hbm [thread:$0]  %s80, 128, %s82, [#allocation4]
    $region17: #{tpu_custom_call.1} parent=1 // pred_fallthru
      _
    // Predicated region
    $region18: #{tpu_custom_call.1} parent=1 // pred_check
      _
    $region19: #{tpu_custom_call.1} parent=1 // pred_check_branch
      %86 = sbr.rel (0) target = $region21
    $region20: #{tpu_custom_call.1} parent=1 // pred_region
      %88 = dma.done [#allocation4], 128
    $region21: #{tpu_custom_call.1} parent=1 // pred_fallthru
      _
    %89 = vsyncpa [#allocation3], 1
    %90 = vsyncpa [#allocation4], 1

</llo_original>
